<compile_context>
chip_gen: v6e
topology: v6e:2x2x1
jax: 0.10.0
libtpu: 0.0.40
codegen_flags: <defaults>
</compile_context>

<pallas_src>
import jax
import jax.numpy as jnp
from jax.experimental import pallas as pl
from jax.experimental.pallas import tpu as pltpu

LANE = 128      # lane width: all feature dims are zero-padded to this
SUBLANE = 8     # f32 sublane granularity for row tiles


def _nested_forward_kernel(x_ref,
                           w0_ref, b00_ref, b01_ref,
                           w1_ref, b10_ref, b11_ref,
                           w2a_ref, b2a0_ref, b2a1_ref,
                           w2b_ref, b2b0_ref, b2b1_ref,
                           w2c_ref, b2c0_ref, b2c1_ref,
                           fbias_ref, o_ref):
    """Fused NestedModel forward on one (TILE_B, 128) row tile."""

    def block(h, w_ref, b0_ref, b1_ref):
        # BlockA / BlockB are mathematically identical: relu(h @ W + b0) + b1
        y = jnp.dot(h, w_ref[...], preferred_element_type=jnp.float32)
        return jnp.maximum(y + b0_ref[...], 0.0) + b1_ref[...]

    h = x_ref[...].astype(jnp.float32)
    h = jnp.maximum(block(h, w0_ref, b00_ref, b01_ref), 0.0)   # relu(block0(x))
    h = jnp.maximum(block(h, w1_ref, b10_ref, b11_ref), 0.0)   # relu(block1(x))
    h = block(h, w2a_ref, b2a0_ref, b2a1_ref)                  # block2[0] (BlockA 7->9)
    h = block(h, w2b_ref, b2b0_ref, b2b1_ref)                  # block2[1] (BlockA 9->9)
    h = block(h, w2c_ref, b2c0_ref, b2c1_ref)                  # block2[2] (BlockB 9->5)
    h = jnp.maximum(h, 0.0)                                    # relu(block2(x))
    o_ref[...] = (h + fbias_ref[...]).astype(o_ref.dtype)      # x + self.bias


def _pad_weight(w):
    w = w.astype(jnp.float32)
    return jnp.pad(w, ((0, LANE - w.shape[0]), (0, LANE - w.shape[1])))


def _pad_bias(b):
    b = b.astype(jnp.float32)
    return jnp.pad(b, (0, LANE - b.shape[0])).reshape(1, LANE)


def nested_model_forward(x: jax.Array, params: dict, *, row_tile: int = 256) -> jax.Array:
    """Forward pass of NestedModel. x: (B, 5) -> (B, 5)."""
    B, in_dim = x.shape
    assert in_dim == params["block0"][0].shape[0]

    # Pad batch to a multiple of the row tile (tile itself a multiple of 8).
    b_pad8 = ((B + SUBLANE - 1) // SUBLANE) * SUBLANE
    tile = min(row_tile, b_pad8)
    tile = ((tile + SUBLANE - 1) // SUBLANE) * SUBLANE
    b_padded = ((b_pad8 + tile - 1) // tile) * tile
    n_tiles = b_padded // tile

    x_p = jnp.pad(x.astype(jnp.float32), ((0, b_padded - B), (0, LANE - in_dim)))

    # Flatten + pad all parameters (lane-dense, zero-padded -> padding stays zero).
    flat = []
    for name in ("block0", "block1", "block2_0", "block2_1", "block2_2"):
        w, b0, b1 = params[name]
        flat.extend([_pad_weight(w), _pad_bias(b0), _pad_bias(b1)])
    fbias = _pad_bias(params["bias"])

    row_spec = pl.BlockSpec((tile, LANE), lambda i: (i, 0))
    w_spec = pl.BlockSpec((LANE, LANE), lambda i: (0, 0))
    b_spec = pl.BlockSpec((1, LANE), lambda i: (0, 0))
    in_specs = [row_spec]
    for _ in range(5):
        in_specs.extend([w_spec, b_spec, b_spec])
    in_specs.append(b_spec)

    # Advisory cost estimate: memory-bound elementwise + 5 tiny matmuls per row tile.
    itemsize = 4
    bytes_accessed = (2 * b_padded * LANE + sum(int(a.size) for a in flat) + fbias.size) * itemsize
    flops = 2 * b_padded * LANE * LANE * 5 + 10 * b_padded * LANE
    cost = pl.CostEstimate(flops=flops, transcendentals=0, bytes_accessed=bytes_accessed)

    out = pl.pallas_call(
        _nested_forward_kernel,
        out_shape=jax.ShapeDtypeStruct((b_padded, LANE), jnp.float32),
        grid_spec=pltpu.PrefetchScalarGridSpec(
            num_scalar_prefetch=0,
            grid=(n_tiles,),
            in_specs=in_specs,
            out_specs=pl.BlockSpec((tile, LANE), lambda i: (i, 0)),
        ),
        compiler_params=pltpu.CompilerParams(
            # Row tiles are independent -> shard across TCs on v7x; neutral on v5e/v6e.
            dimension_semantics=("parallel",),
            vmem_limit_bytes=32 * 1024 * 1024,
        ),
        cost_estimate=cost,
    )(x_p, *flat, fbias)

    # Slice back to the logical (B, 5) result (wrapper-side layout plumbing only).
    out_dim = params["bias"].shape[0]
    return out[:B, :out_dim]


def _ref_forward(x, params):
    """Plain-JAX reference of the PyTorch semantics."""
    def block(h, p):
        w, b0, b1 = p
        return jnp.maximum(h @ w + b0, 0.0) + b1

    h = jnp.maximum(block(x, params["block0"]), 0.0)
    h = jnp.maximum(block(h, params["block1"]), 0.0)
    h = block(h, params["block2_0"])
    h = block(h, params["block2_1"])
    h = block(h, params["block2_2"])
    h = jnp.maximum(h, 0.0)
    return h + params["bias"]


if __name__ == "__main__":
    # Deterministic parameter init (stand-in for torch.manual_seed(0); randn -> normal).
    # TODO(synk): FSDP wrapping / optimizer-state utilities / backward are training
    # infrastructure with no forward-pass Pallas equivalent; only forward is implemented.
    key = jax.random.PRNGKey(0)
    keys = jax.random.split(key, 17)

    def make_block(k0, k1, k2, in_dim, out_dim):
        return (jax.random.normal(k0, (in_dim, out_dim), dtype=jnp.float32),
                jax.random.normal(k1, (out_dim,), dtype=jnp.float32),
                jax.random.normal(k2, (out_dim,), dtype=jnp.float32))

    params = {
        "block0":   make_block(keys[0], keys[1], keys[2], 5, 3),
        "block1":   make_block(keys[3], keys[4], keys[5], 3, 7),
        "block2_0": make_block(keys[6], keys[7], keys[8], 7, 9),
        "block2_1": make_block(keys[9], keys[10], keys[11], 9, 9),
        "block2_2": make_block(keys[12], keys[13], keys[14], 9, 5),
        "bias":     jax.random.normal(keys[15], (5,), dtype=jnp.float32),
    }

    BATCH_SIZE = 8  # matches NestedModel.get_input
    x = jax.random.normal(keys[16], (BATCH_SIZE, 5), dtype=jnp.float32)

    out = nested_model_forward(x, params)
    jax.block_until_ready(out)

    ref = _ref_forward(x, params)
    assert out.shape == (BATCH_SIZE, 5) and out.dtype == jnp.float32
    assert jnp.allclose(out, ref, atol=1e-4, rtol=1e-4), float(jnp.max(jnp.abs(out - ref)))

    print("KERNEL_OK")
</pallas_src>

<mosaic_0001>
module attributes {stable_mosaic.version = 11 : i64} {
  func.func @_nested_forward_kernel(%arg0: i32, %arg1: memref<8x128xf32, #tpu.memory_space<vmem>>, %arg2: memref<128x128xf32, #tpu.memory_space<vmem>>, %arg3: memref<1x128xf32, #tpu.memory_space<vmem>>, %arg4: memref<1x128xf32, #tpu.memory_space<vmem>>, %arg5: memref<128x128xf32, #tpu.memory_space<vmem>>, %arg6: memref<1x128xf32, #tpu.memory_space<vmem>>, %arg7: memref<1x128xf32, #tpu.memory_space<vmem>>, %arg8: memref<128x128xf32, #tpu.memory_space<vmem>>, %arg9: memref<1x128xf32, #tpu.memory_space<vmem>>, %arg10: memref<1x128xf32, #tpu.memory_space<vmem>>, %arg11: memref<128x128xf32, #tpu.memory_space<vmem>>, %arg12: memref<1x128xf32, #tpu.memory_space<vmem>>, %arg13: memref<1x128xf32, #tpu.memory_space<vmem>>, %arg14: memref<128x128xf32, #tpu.memory_space<vmem>>, %arg15: memref<1x128xf32, #tpu.memory_space<vmem>>, %arg16: memref<1x128xf32, #tpu.memory_space<vmem>>, %arg17: memref<1x128xf32, #tpu.memory_space<vmem>>, %arg18: memref<8x128xf32, #tpu.memory_space<vmem>>) attributes {dimension_semantics = [#tpu.dimension_semantics<parallel>], iteration_bounds = array<i64: 1>, scalar_prefetch = 0 : i64, scratch_operands = 0 : i64, tpu.core_type = #tpu.core_type<tc>, window_params = [{transform_indices = @transform_0, window_bounds = array<i64: 8, 128>}, {pipeline_mode = #tpu.pipeline_mode<synchronous>, transform_indices = @transform_1, window_bounds = array<i64: 128, 128>}, {pipeline_mode = #tpu.pipeline_mode<synchronous>, transform_indices = @transform_2, window_bounds = array<i64: 1, 128>}, {pipeline_mode = #tpu.pipeline_mode<synchronous>, transform_indices = @transform_3, window_bounds = array<i64: 1, 128>}, {pipeline_mode = #tpu.pipeline_mode<synchronous>, transform_indices = @transform_4, window_bounds = array<i64: 128, 128>}, {pipeline_mode = #tpu.pipeline_mode<synchronous>, transform_indices = @transform_5, window_bounds = array<i64: 1, 128>}, {pipeline_mode = #tpu.pipeline_mode<synchronous>, transform_indices = @transform_6, window_bounds = array<i64: 1, 128>}, {pipeline_mode = #tpu.pipeline_mode<synchronous>, transform_indices = @transform_7, window_bounds = array<i64: 128, 128>}, {pipeline_mode = #tpu.pipeline_mode<synchronous>, transform_indices = @transform_8, window_bounds = array<i64: 1, 128>}, {pipeline_mode = #tpu.pipeline_mode<synchronous>, transform_indices = @transform_9, window_bounds = array<i64: 1, 128>}, {pipeline_mode = #tpu.pipeline_mode<synchronous>, transform_indices = @transform_10, window_bounds = array<i64: 128, 128>}, {pipeline_mode = #tpu.pipeline_mode<synchronous>, transform_indices = @transform_11, window_bounds = array<i64: 1, 128>}, {pipeline_mode = #tpu.pipeline_mode<synchronous>, transform_indices = @transform_12, window_bounds = array<i64: 1, 128>}, {pipeline_mode = #tpu.pipeline_mode<synchronous>, transform_indices = @transform_13, window_bounds = array<i64: 128, 128>}, {pipeline_mode = #tpu.pipeline_mode<synchronous>, transform_indices = @transform_14, window_bounds = array<i64: 1, 128>}, {pipeline_mode = #tpu.pipeline_mode<synchronous>, transform_indices = @transform_15, window_bounds = array<i64: 1, 128>}, {pipeline_mode = #tpu.pipeline_mode<synchronous>, transform_indices = @transform_16, window_bounds = array<i64: 1, 128>}, {transform_indices = @transform_17, window_bounds = array<i64: 8, 128>}]} {
    %c0 = arith.constant 0 : index
    %c0_0 = arith.constant 0 : index
    %0 = vector.load %arg1[%c0, %c0_0] : memref<8x128xf32, #tpu.memory_space<vmem>>, vector<8x128xf32>
    %c0_1 = arith.constant 0 : index
    %c0_2 = arith.constant 0 : index
    %1 = vector.load %arg2[%c0_1, %c0_2] : memref<128x128xf32, #tpu.memory_space<vmem>>, vector<128x128xf32>
    %cst = arith.constant dense<0.000000e+00> : vector<8x128xf32>
    %2 = tpu.matmul %0, %1, %cst {dimension_numbers = #tpu.dot_dimension_numbers<[1], [0], [0], [1], [0, 0, 1, 1], [], []>} : vector<8x128xf32>, vector<128x128xf32>, vector<8x128xf32> -> vector<8x128xf32>
    %c0_3 = arith.constant 0 : index
    %c0_4 = arith.constant 0 : index
    %3 = vector.load %arg3[%c0_3, %c0_4] : memref<1x128xf32, #tpu.memory_space<vmem>>, vector<1x128xf32>
    %4 = vector.broadcast %3 : vector<1x128xf32> to vector<8x128xf32>
    %5 = arith.addf %2, %4 : vector<8x128xf32>
    %cst_5 = arith.constant 0.000000e+00 : f32
    %6 = vector.broadcast %cst_5 : f32 to vector<8x128xf32>
    %7 = arith.maximumf %5, %6 : vector<8x128xf32>
    %c0_6 = arith.constant 0 : index
    %c0_7 = arith.constant 0 : index
    %8 = vector.load %arg4[%c0_6, %c0_7] : memref<1x128xf32, #tpu.memory_space<vmem>>, vector<1x128xf32>
    %9 = vector.broadcast %8 : vector<1x128xf32> to vector<8x128xf32>
    %10 = arith.addf %7, %9 : vector<8x128xf32>
    %cst_8 = arith.constant 0.000000e+00 : f32
    %11 = vector.broadcast %cst_8 : f32 to vector<8x128xf32>
    %12 = arith.maximumf %10, %11 : vector<8x128xf32>
    %c0_9 = arith.constant 0 : index
    %c0_10 = arith.constant 0 : index
    %13 = vector.load %arg5[%c0_9, %c0_10] : memref<128x128xf32, #tpu.memory_space<vmem>>, vector<128x128xf32>
    %cst_11 = arith.constant dense<0.000000e+00> : vector<8x128xf32>
    %14 = tpu.matmul %12, %13, %cst_11 {dimension_numbers = #tpu.dot_dimension_numbers<[1], [0], [0], [1], [0, 0, 1, 1], [], []>} : vector<8x128xf32>, vector<128x128xf32>, vector<8x128xf32> -> vector<8x128xf32>
    %c0_12 = arith.constant 0 : index
    %c0_13 = arith.constant 0 : index
    %15 = vector.load %arg6[%c0_12, %c0_13] : memref<1x128xf32, #tpu.memory_space<vmem>>, vector<1x128xf32>
    %16 = vector.broadcast %15 : vector<1x128xf32> to vector<8x128xf32>
    %17 = arith.addf %14, %16 : vector<8x128xf32>
    %cst_14 = arith.constant 0.000000e+00 : f32
    %18 = vector.broadcast %cst_14 : f32 to vector<8x128xf32>
    %19 = arith.maximumf %17, %18 : vector<8x128xf32>
    %c0_15 = arith.constant 0 : index
    %c0_16 = arith.constant 0 : index
    %20 = vector.load %arg7[%c0_15, %c0_16] : memref<1x128xf32, #tpu.memory_space<vmem>>, vector<1x128xf32>
    %21 = vector.broadcast %20 : vector<1x128xf32> to vector<8x128xf32>
    %22 = arith.addf %19, %21 : vector<8x128xf32>
    %cst_17 = arith.constant 0.000000e+00 : f32
    %23 = vector.broadcast %cst_17 : f32 to vector<8x128xf32>
    %24 = arith.maximumf %22, %23 : vector<8x128xf32>
    %c0_18 = arith.constant 0 : index
    %c0_19 = arith.constant 0 : index
    %25 = vector.load %arg8[%c0_18, %c0_19] : memref<128x128xf32, #tpu.memory_space<vmem>>, vector<128x128xf32>
    %cst_20 = arith.constant dense<0.000000e+00> : vector<8x128xf32>
    %26 = tpu.matmul %24, %25, %cst_20 {dimension_numbers = #tpu.dot_dimension_numbers<[1], [0], [0], [1], [0, 0, 1, 1], [], []>} : vector<8x128xf32>, vector<128x128xf32>, vector<8x128xf32> -> vector<8x128xf32>
    %c0_21 = arith.constant 0 : index
    %c0_22 = arith.constant 0 : index
    %27 = vector.load %arg9[%c0_21, %c0_22] : memref<1x128xf32, #tpu.memory_space<vmem>>, vector<1x128xf32>
    %28 = vector.broadcast %27 : vector<1x128xf32> to vector<8x128xf32>
    %29 = arith.addf %26, %28 : vector<8x128xf32>
    %cst_23 = arith.constant 0.000000e+00 : f32
    %30 = vector.broadcast %cst_23 : f32 to vector<8x128xf32>
    %31 = arith.maximumf %29, %30 : vector<8x128xf32>
    %c0_24 = arith.constant 0 : index
    %c0_25 = arith.constant 0 : index
    %32 = vector.load %arg10[%c0_24, %c0_25] : memref<1x128xf32, #tpu.memory_space<vmem>>, vector<1x128xf32>
    %33 = vector.broadcast %32 : vector<1x128xf32> to vector<8x128xf32>
    %34 = arith.addf %31, %33 : vector<8x128xf32>
    %c0_26 = arith.constant 0 : index
    %c0_27 = arith.constant 0 : index
    %35 = vector.load %arg11[%c0_26, %c0_27] : memref<128x128xf32, #tpu.memory_space<vmem>>, vector<128x128xf32>
    %cst_28 = arith.constant dense<0.000000e+00> : vector<8x128xf32>
    %36 = tpu.matmul %34, %35, %cst_28 {dimension_numbers = #tpu.dot_dimension_numbers<[1], [0], [0], [1], [0, 0, 1, 1], [], []>} : vector<8x128xf32>, vector<128x128xf32>, vector<8x128xf32> -> vector<8x128xf32>
    %c0_29 = arith.constant 0 : index
    %c0_30 = arith.constant 0 : index
    %37 = vector.load %arg12[%c0_29, %c0_30] : memref<1x128xf32, #tpu.memory_space<vmem>>, vector<1x128xf32>
    %38 = vector.broadcast %37 : vector<1x128xf32> to vector<8x128xf32>
    %39 = arith.addf %36, %38 : vector<8x128xf32>
    %cst_31 = arith.constant 0.000000e+00 : f32
    %40 = vector.broadcast %cst_31 : f32 to vector<8x128xf32>
    %41 = arith.maximumf %39, %40 : vector<8x128xf32>
    %c0_32 = arith.constant 0 : index
    %c0_33 = arith.constant 0 : index
    %42 = vector.load %arg13[%c0_32, %c0_33] : memref<1x128xf32, #tpu.memory_space<vmem>>, vector<1x128xf32>
    %43 = vector.broadcast %42 : vector<1x128xf32> to vector<8x128xf32>
    %44 = arith.addf %41, %43 : vector<8x128xf32>
    %c0_34 = arith.constant 0 : index
    %c0_35 = arith.constant 0 : index
    %45 = vector.load %arg14[%c0_34, %c0_35] : memref<128x128xf32, #tpu.memory_space<vmem>>, vector<128x128xf32>
    %cst_36 = arith.constant dense<0.000000e+00> : vector<8x128xf32>
    %46 = tpu.matmul %44, %45, %cst_36 {dimension_numbers = #tpu.dot_dimension_numbers<[1], [0], [0], [1], [0, 0, 1, 1], [], []>} : vector<8x128xf32>, vector<128x128xf32>, vector<8x128xf32> -> vector<8x128xf32>
    %c0_37 = arith.constant 0 : index
    %c0_38 = arith.constant 0 : index
    %47 = vector.load %arg15[%c0_37, %c0_38] : memref<1x128xf32, #tpu.memory_space<vmem>>, vector<1x128xf32>
    %48 = vector.broadcast %47 : vector<1x128xf32> to vector<8x128xf32>
    %49 = arith.addf %46, %48 : vector<8x128xf32>
    %cst_39 = arith.constant 0.000000e+00 : f32
    %50 = vector.broadcast %cst_39 : f32 to vector<8x128xf32>
    %51 = arith.maximumf %49, %50 : vector<8x128xf32>
    %c0_40 = arith.constant 0 : index
    %c0_41 = arith.constant 0 : index
    %52 = vector.load %arg16[%c0_40, %c0_41] : memref<1x128xf32, #tpu.memory_space<vmem>>, vector<1x128xf32>
    %53 = vector.broadcast %52 : vector<1x128xf32> to vector<8x128xf32>
    %54 = arith.addf %51, %53 : vector<8x128xf32>
    %cst_42 = arith.constant 0.000000e+00 : f32
    %55 = vector.broadcast %cst_42 : f32 to vector<8x128xf32>
    %56 = arith.maximumf %54, %55 : vector<8x128xf32>
    %c0_43 = arith.constant 0 : index
    %c0_44 = arith.constant 0 : index
    %57 = vector.load %arg17[%c0_43, %c0_44] : memref<1x128xf32, #tpu.memory_space<vmem>>, vector<1x128xf32>
    %58 = vector.broadcast %57 : vector<1x128xf32> to vector<8x128xf32>
    %59 = arith.addf %56, %58 : vector<8x128xf32>
    %c0_45 = arith.constant 0 : index
    %c0_46 = arith.constant 0 : index
    %60 = vector.load %arg18[%c0_45, %c0_46] : memref<8x128xf32, #tpu.memory_space<vmem>>, vector<8x128xf32>
    tpu.vector_store %arg18[%c0_45, %c0_46], %59 {strides = array<i32>} : memref<8x128xf32, #tpu.memory_space<vmem>>, vector<8x128xf32>,
    return
  }
  func.func @transform_0(%arg0: i32) -> (i32, i32) {
    %c0_i32 = arith.constant 0 : i32
    %c0_i32_0 = arith.constant 0 : i32
    return %arg0, %c0_i32 : i32, i32
  }
  func.func @transform_1(%arg0: i32) -> (i32, i32) {
    %c0_i32 = arith.constant 0 : i32
    %c0_i32_0 = arith.constant 0 : i32
    %c0_i32_1 = arith.constant 0 : i32
    return %c0_i32, %c0_i32_0 : i32, i32
  }
  func.func @transform_2(%arg0: i32) -> (i32, i32) {
    %c0_i32 = arith.constant 0 : i32
    %c0_i32_0 = arith.constant 0 : i32
    %c0_i32_1 = arith.constant 0 : i32
    return %c0_i32, %c0_i32_0 : i32, i32
  }
  func.func @transform_3(%arg0: i32) -> (i32, i32) {
    %c0_i32 = arith.constant 0 : i32
    %c0_i32_0 = arith.constant 0 : i32
    %c0_i32_1 = arith.constant 0 : i32
    return %c0_i32, %c0_i32_0 : i32, i32
  }
  func.func @transform_4(%arg0: i32) -> (i32, i32) {
    %c0_i32 = arith.constant 0 : i32
    %c0_i32_0 = arith.constant 0 : i32
    %c0_i32_1 = arith.constant 0 : i32
    return %c0_i32, %c0_i32_0 : i32, i32
  }
  func.func @transform_5(%arg0: i32) -> (i32, i32) {
    %c0_i32 = arith.constant 0 : i32
    %c0_i32_0 = arith.constant 0 : i32
    %c0_i32_1 = arith.constant 0 : i32
    return %c0_i32, %c0_i32_0 : i32, i32
  }
  func.func @transform_6(%arg0: i32) -> (i32, i32) {
    %c0_i32 = arith.constant 0 : i32
    %c0_i32_0 = arith.constant 0 : i32
    %c0_i32_1 = arith.constant 0 : i32
    return %c0_i32, %c0_i32_0 : i32, i32
  }
  func.func @transform_7(%arg0: i32) -> (i32, i32) {
    %c0_i32 = arith.constant 0 : i32
    %c0_i32_0 = arith.constant 0 : i32
    %c0_i32_1 = arith.constant 0 : i32
    return %c0_i32, %c0_i32_0 : i32, i32
  }
  func.func @transform_8(%arg0: i32) -> (i32, i32) {
    %c0_i32 = arith.constant 0 : i32
    %c0_i32_0 = arith.constant 0 : i32
    %c0_i32_1 = arith.constant 0 : i32
    return %c0_i32, %c0_i32_0 : i32, i32
  }
  func.func @transform_9(%arg0: i32) -> (i32, i32) {
    %c0_i32 = arith.constant 0 : i32
    %c0_i32_0 = arith.constant 0 : i32
    %c0_i32_1 = arith.constant 0 : i32
    return %c0_i32, %c0_i32_0 : i32, i32
  }
  func.func @transform_10(%arg0: i32) -> (i32, i32) {
    %c0_i32 = arith.constant 0 : i32
    %c0_i32_0 = arith.constant 0 : i32
    %c0_i32_1 = arith.constant 0 : i32
    return %c0_i32, %c0_i32_0 : i32, i32
  }
  func.func @transform_11(%arg0: i32) -> (i32, i32) {
    %c0_i32 = arith.constant 0 : i32
    %c0_i32_0 = arith.constant 0 : i32
    %c0_i32_1 = arith.constant 0 : i32
    return %c0_i32, %c0_i32_0 : i32, i32
  }
  func.func @transform_12(%arg0: i32) -> (i32, i32) {
    %c0_i32 = arith.constant 0 : i32
    %c0_i32_0 = arith.constant 0 : i32
    %c0_i32_1 = arith.constant 0 : i32
    return %c0_i32, %c0_i32_0 : i32, i32
  }
  func.func @transform_13(%arg0: i32) -> (i32, i32) {
    %c0_i32 = arith.constant 0 : i32
    %c0_i32_0 = arith.constant 0 : i32
    %c0_i32_1 = arith.constant 0 : i32
    return %c0_i32, %c0_i32_0 : i32, i32
  }
  func.func @transform_14(%arg0: i32) -> (i32, i32) {
    %c0_i32 = arith.constant 0 : i32
    %c0_i32_0 = arith.constant 0 : i32
    %c0_i32_1 = arith.constant 0 : i32
    return %c0_i32, %c0_i32_0 : i32, i32
  }
  func.func @transform_15(%arg0: i32) -> (i32, i32) {
    %c0_i32 = arith.constant 0 : i32
    %c0_i32_0 = arith.constant 0 : i32
    %c0_i32_1 = arith.constant 0 : i32
    return %c0_i32, %c0_i32_0 : i32, i32
  }
  func.func @transform_16(%arg0: i32) -> (i32, i32) {
    %c0_i32 = arith.constant 0 : i32
    %c0_i32_0 = arith.constant 0 : i32
    %c0_i32_1 = arith.constant 0 : i32
    return %c0_i32, %c0_i32_0 : i32, i32
  }
  func.func @transform_17(%arg0: i32) -> (i32, i32) {
    %c0_i32 = arith.constant 0 : i32
    %c0_i32_0 = arith.constant 0 : i32
    return %arg0, %c0_i32 : i32, i32
  }
}

</mosaic_0001>

<llo_original>
// kernel: tpu_custom_call.1
$region0: #{tpu_custom_call.1}
  #allocation0 [shape = 'u32[]', space=smem, size = 0x4, offset = 0x4, fixed_abs, tag = 'smem constant byte address 0x4 - core index']
  #allocation1 [shape = 'u32[144,128]{1,0:T(1,128)}', space=vmem, size = 0x12000, scoped, tag = 'internal scratch']
  %s0 = inlined_call_operand.hbm [shape: f32[8,128], index: 0, kind: input, shape index: {}]
  %s1 = inlined_call_operand.hbm [shape: f32[128,128], index: 1, kind: input, shape index: {}]
  %s2 = inlined_call_operand.vmem [shape: f32[1,128], index: 2, kind: input, shape index: {}]
  %s3 = inlined_call_operand.vmem [shape: f32[1,128], index: 3, kind: input, shape index: {}]
  %s4 = inlined_call_operand.hbm [shape: f32[128,128], index: 4, kind: input, shape index: {}]
  %s5 = inlined_call_operand.vmem [shape: f32[1,128], index: 5, kind: input, shape index: {}]
  %s6 = inlined_call_operand.vmem [shape: f32[1,128], index: 6, kind: input, shape index: {}]
  %s7 = inlined_call_operand.hbm [shape: f32[128,128], index: 7, kind: input, shape index: {}]
  %s8 = inlined_call_operand.vmem [shape: f32[1,128], index: 8, kind: input, shape index: {}]
  %s9 = inlined_call_operand.vmem [shape: f32[1,128], index: 9, kind: input, shape index: {}]
  %s10 = inlined_call_operand.hbm [shape: f32[128,128], index: 10, kind: input, shape index: {}]
  %s11 = inlined_call_operand.vmem [shape: f32[1,128], index: 11, kind: input, shape index: {}]
  %s12 = inlined_call_operand.vmem [shape: f32[1,128], index: 12, kind: input, shape index: {}]
  %s13 = inlined_call_operand.hbm [shape: f32[128,128], index: 13, kind: input, shape index: {}]
  %s14 = inlined_call_operand.vmem [shape: f32[1,128], index: 14, kind: input, shape index: {}]
  %s15 = inlined_call_operand.vmem [shape: f32[1,128], index: 15, kind: input, shape index: {}]
  %s16 = inlined_call_operand.vmem [shape: f32[1,128], index: 16, kind: input, shape index: {}]
  %s17 = inlined_call_operand.hbm [shape: f32[8,128], index: 17, kind: output, shape index: {}]
  %s18 = sld [smem:[#allocation0]]
  $region102: #{tpu_custom_call.1} parent=0
    _
  %s20 = ssub.s32 1, %s18
  %s21 = scalar_select 0, %s20, %s18
  $region1: #{tpu_custom_call.1} parent=0
    #allocation2 [shape = 'u8[4096]{0}', space=vmem, size = 0x1000, scoped, tag = 'input window, operand 0, single buffered']
    #allocation3 [shape = 's32[1]{0}', space=sflag, size = 0x4, scoped, tag = 'scoped memory for tpu_custom_call.1']
    #allocation4 [shape = 's32[1]{0}', space=sflag, size = 0x4, scoped, tag = 'scoped memory for tpu_custom_call.1']
    #allocation5 [shape = 'u8[65536]{0}', space=vmem, size = 0x10000, scoped, tag = 'input window, operand 1, single buffered']
    #allocation6 [shape = 's32[1]{0}', space=sflag, size = 0x4, scoped, tag = 'scoped memory for tpu_custom_call.1']
    #allocation7 [shape = 'u8[65536]{0}', space=vmem, size = 0x10000, scoped, tag = 'input window, operand 4, single buffered']
    #allocation8 [shape = 'u8[65536]{0}', space=vmem, size = 0x10000, scoped, tag = 'input window, operand 7, single buffered']
    #allocation9 [shape = 's32[1]{0}', space=sflag, size = 0x4, scoped, tag = 'scoped memory for tpu_custom_call.1']
    #allocation10 [shape = 'u8[65536]{0}', space=vmem, size = 0x10000, scoped, tag = 'input window, operand 10, single buffered']
    #allocation11 [shape = 'u8[65536]{0}', space=vmem, size = 0x10000, scoped, tag = 'input window, operand 13, single buffered']
    #allocation12 [shape = 's32[1]{0}', space=sflag, size = 0x4, scoped, tag = 'scoped memory for tpu_custom_call.1']
    #allocation13 [shape = 'u8[4096]{0}', space=vmem, size = 0x1000, scoped, tag = 'output window, operand 0, single buffered']
    %22 = vsyncpa [#allocation3], 0
    %23 = vsyncpa [#allocation6], 0
    %24 = vsyncpa [#allocation9], 0
    %25 = vsyncpa [#allocation12], 0
    %26 = vsyncpa [#allocation4], 0
    // Predicated region
    $region2: #{tpu_custom_call.1} parent=1 // pred_check
      _
    $region3: #{tpu_custom_call.1} parent=1 // pred_check_branch
      %28 = sbr.rel (0) target = $region5
    $region4: #{tpu_custom_call.1} parent=1 // pred_region
      %s30 = ssub.s32 128, 128
      %31 = vsyncadd [#allocation3], %s30
      %s33 = sshll.u32 [#allocation2], 4
      %s34 = int_to_ptr.vmem [resolvable:$true] %s33
      %36 = dma.hbm_to_vmem [thread:$0]  %s0, 128, %s34, [#allocation3]
    $region5: #{tpu_custom_call.1} parent=1 // pred_fallthru
      _
    // Predicated region
    $region6: #{tpu_custom_call.1} parent=1 // pred_check
      _
    $region7: #{tpu_custom_call.1} parent=1 // pred_check_branch
      %38 = sbr.rel (0) target = $region9
    $region8: #{tpu_custom_call.1} parent=1 // pred_region
      %s40 = ssub.s32 2048, 2048
      %41 = vsyncadd [#allocation6], %s40
      %s42 = sshll.u32 [#allocation5], 4
      %s43 = int_to_ptr.vmem [resolvable:$true] %s42
      %48 = dma.hbm_to_vmem [thread:$0]  %s1, 2048, %s43, [#allocation6], 128, 128, 8
    $region9: #{tpu_custom_call.1} parent=1 // pred_fallthru
      _
    // Predicated region
    $region10: #{tpu_custom_call.1} parent=1 // pred_check
      _
    $region11: #{tpu_custom_call.1} parent=1 // pred_check_branch
      %50 = sbr.rel (0) target = $region13
    $region12: #{tpu_custom_call.1} parent=1 // pred_region
      _
    $region13: #{tpu_custom_call.1} parent=1 // pred_fallthru
      _
    // Predicated region
    $region14: #{tpu_custom_call.1} parent=1 // pred_check
      _
    $region15: #{tpu_custom_call.1} parent=1 // pred_check_branch
      %52 = sbr.rel (0) target = $region17
    $region16: #{tpu_custom_call.1} parent=1 // pred_region
      _
    $region17: #{tpu_custom_call.1} parent=1 // pred_fallthru
      _
    // Predicated region
    $region18: #{tpu_custom_call.1} parent=1 // pred_check
      _
    $region19: #{tpu_custom_call.1} parent=1 // pred_check_branch
      %54 = sbr.rel (0) target = $region21
    $region20: #{tpu_custom_call.1} parent=1 // pred_region
      %s56 = ssub.s32 2048, 2048
      %57 = vsyncadd [#allocation6], %s56
      %s58 = sshll.u32 [#allocation7], 4
      %s59 = int_to_ptr.vmem [resolvable:$true] %s58
      %64 = dma.hbm_to_vmem [thread:$0]  %s4, 2048, %s59, [#allocation6], 128, 128, 8
    $region21: #{tpu_custom_call.1} parent=1 // pred_fallthru
      _
    // Predicated region
    $region22: #{tpu_custom_call.1} parent=1 // pred_check
      _
    $region23: #{tpu_custom_call.1} parent=1 // pred_check_branch
      %66 = sbr.rel (0) target = $region25
    $region24: #{tpu_custom_call.1} parent=1 // pred_region
      _
    $region25: #{tpu_custom_call.1} parent=1 // pred_fallthru
      _
    // Predicated region
    $region26: #{tpu_custom_call.1} parent=1 // pred_check
      _
    $region27: #{tpu_custom_call.1} parent=1 // pred_check_branch
      %68 = sbr.rel (0) target = $region29
    $region28: #{tpu_custom_call.1} parent=1 // pred_region
      _
    $region29: #{tpu_custom_call.1} parent=1 // pred_fallthru
      _
    // Predicated region
    $region30: #{tpu_custom_call.1} parent=1 // pred_check
      _
    $region31: #{tpu_custom_call.1} parent=1 // pred_check_branch
      %70 = sbr.rel (0) target = $region33
    $region32: #{tpu_custom_call.1} parent=1 // pred_region
      %s72 = ssub.s32 2048, 2048
      %73 = vsyncadd [#allocation9], %s72
      %s74 = sshll.u32 [#allocation8], 4
      %s75 = int_to_ptr.vmem [resolvable:$true] %s74
      %80 = dma.hbm_to_vmem [thread:$0]  %s7, 2048, %s75, [#allocation9], 128, 128, 8
    $region33: #{tpu_custom_call.1} parent=1 // pred_fallthru
      _
    // Predicated region
    $region34: #{tpu_custom_call.1} parent=1 // pred_check
      _
    $region35: #{tpu_custom_call.1} parent=1 // pred_check_branch
      %82 = sbr.rel (0) target = $region37
    $region36: #{tpu_custom_call.1} parent=1 // pred_region
      _
    $region37: #{tpu_custom_call.1} parent=1 // pred_fallthru
      _
    // Predicated region
    $region38: #{tpu_custom_call.1} parent=1 // pred_check
      _
    $region39: #{tpu_custom_call.1} parent=1 // pred_check_branch
      %84 = sbr.rel (0) target = $region41
    $region40: #{tpu_custom_call.1} parent=1 // pred_region
      _
    $region41: #{tpu_custom_call.1} parent=1 // pred_fallthru
      _
    // Predicated region
    $region42: #{tpu_custom_call.1} parent=1 // pred_check
      _
    $region43: #{tpu_custom_call.1} parent=1 // pred_check_branch
      %86 = sbr.rel (0) target = $region45
    $region44: #{tpu_custom_call.1} parent=1 // pred_region
      %s88 = ssub.s32 2048, 2048
      %89 = vsyncadd [#allocation9], %s88
      %s90 = sshll.u32 [#allocation10], 4
      %s91 = int_to_ptr.vmem [resolvable:$true] %s90
      %96 = dma.hbm_to_vmem [thread:$0]  %s10, 2048, %s91, [#allocation9], 128, 128, 8
    $region45: #{tpu_custom_call.1} parent=1 // pred_fallthru
      _
    // Predicated region
    $region46: #{tpu_custom_call.1} parent=1 // pred_check
      _
    $region47: #{tpu_custom_call.1} parent=1 // pred_check_branch
      %98 = sbr.rel (0) target = $region49
    $region48: #{tpu_custom_call.1} parent=1 // pred_region
      _
    $region49: #{tpu_custom_call.1} parent=1 // pred_fallthru
      _
    // Predicated region
    $region50: #{tpu_custom_call.1} parent=1 // pred_check
      _
    $region51: #{tpu_custom_call.1} parent=1 // pred_check_branch
      %100 = sbr.rel (0) target = $region53
    $region52: #{tpu_custom_call.1} parent=1 // pred_region
      _
    $region53: #{tpu_custom_call.1} parent=1 // pred_fallthru
      _
    // Predicated region
    $region54: #{tpu_custom_call.1} parent=1 // pred_check
      _
    $region55: #{tpu_custom_call.1} parent=1 // pred_check_branch
      %102 = sbr.rel (0) target = $region57
    $region56: #{tpu_custom_call.1} parent=1 // pred_region
      %s104 = ssub.s32 2048, 2048
      %105 = vsyncadd [#allocation12], %s104
      %s106 = sshll.u32 [#allocation11], 4
      %s107 = int_to_ptr.vmem [resolvable:$true] %s106
      %112 = dma.hbm_to_vmem [thread:$0]  %s13, 2048, %s107, [#allocation12], 128, 128, 8
    $region57: #{tpu_custom_call.1} parent=1 // pred_fallthru
      _
    // Predicated region
    $region58: #{tpu_custom_call.1} parent=1 // pred_check
      _
    $region59: #{tpu_custom_call.1} parent=1 // pred_check_branch
      %114 = sbr.rel (0) target = $region61
    $region60: #{tpu_custom_call.1} parent=1 // pred_region
      _
    $region61: #{tpu_custom_call.1} parent=1 // pred_fallthru
      _
    // Predicated region
    $region62: #{tpu_custom_call.1} parent=1 // pred_check
      _
    $region63: #{tpu_custom_call.1} parent=1 // pred_check_branch
      %116 = sbr.rel (0) target = $region65
    $region64: #{tpu_custom_call.1} parent=1 // pred_region
      _
    $region65: #{tpu_custom_call.1} parent=1 // pred_fallthru
      _
    // Predicated region
    $region66: #{tpu_custom_call.1} parent=1 // pred_check
      _
    $region67: #{tpu_custom_call.1} parent=1 // pred_check_branch
      %118 = sbr.rel (0) target = $region69
    $region68: #{tpu_custom_call.1} parent=1 // pred_region
      _
    $region69: #{tpu_custom_call.1} parent=1 // pred_fallthru
      _
    // Predicated region
    $region70: #{tpu_custom_call.1} parent=1 // pred_check
      _
    $region71: #{tpu_custom_call.1} parent=1 // pred_check_branch
      %120 = sbr.rel (0) target = $region73
    $region72: #{tpu_custom_call.1} parent=1 // pred_region
      %121 = dma.done [#allocation3], 128
    $region73: #{tpu_custom_call.1} parent=1 // pred_fallthru
      _
    // Predicated region
    $region74: #{tpu_custom_call.1} parent=1 // pred_check
      _
    $region75: #{tpu_custom_call.1} parent=1 // pred_check_branch
      %123 = sbr.rel (0) target = $region77
    $region76: #{tpu_custom_call.1} parent=1 // pred_region
      %124 = dma.done [#allocation6], 2048
    $region77: #{tpu_custom_call.1} parent=1 // pred_fallthru
      _
    // Predicated region
    $region78: #{tpu_custom_call.1} parent=1 // pred_check
      _
    $region79: #{tpu_custom_call.1} parent=1 // pred_check_branch
      %126 = sbr.rel (0) target = $region81
    $region80: #{tpu_custom_call.1} parent=1 // pred_region
      %127 = dma.done [#allocation6], 2048
    $region81: #{tpu_custom_call.1} parent=1 // pred_fallthru
      _
    // Predicated region
    $region82: #{tpu_custom_call.1} parent=1 // pred_check
      _
    $region83: #{tpu_custom_call.1} parent=1 // pred_check_branch
      %129 = sbr.rel (0) target = $region85
    $region84: #{tpu_custom_call.1} parent=1 // pred_region
      %130 = dma.done [#allocation9], 2048
    $region85: #{tpu_custom_call.1} parent=1 // pred_fallthru
      _
    // Predicated region
    $region86: #{tpu_custom_call.1} parent=1 // pred_check
      _
    $region87: #{tpu_custom_call.1} parent=1 // pred_check_branch
      %132 = sbr.rel (0) target = $region89
    $region88: #{tpu_custom_call.1} parent=1 // pred_region
      %133 = dma.done [#allocation9], 2048
    $region89: #{tpu_custom_call.1} parent=1 // pred_fallthru
      _
    // Predicated region
    $region90: #{tpu_custom_call.1} parent=1 // pred_check
      _
    $region91: #{tpu_custom_call.1} parent=1 // pred_check_branch
      %135 = sbr.rel (0) target = $region93
    $region92: #{tpu_custom_call.1} parent=1 // pred_region
      %136 = dma.done [#allocation12], 2048
    $region93: #{tpu_custom_call.1} parent=1 // pred_fallthru
      _
    %v137 = vld [vmem:[#allocation2] sm:$0xff]
    %v138 = vld [vmem:[#allocation5] sm:$0xff]
    %v139 = vld [vmem:[#allocation5 + $0x8] sm:$0xff]
    %v140 = vld [vmem:[#allocation5 + $0x10] sm:$0xff]
    %v141 = vld [vmem:[#allocation5 + $0x18] sm:$0xff]
    %v142 = vld [vmem:[#allocation5 + $0x20] sm:$0xff]
    %v143 = vld [vmem:[#allocation5 + $0x28] sm:$0xff]
    %v144 = vld [vmem:[#allocation5 + $0x30] sm:$0xff]
    %v145 = vld [vmem:[#allocation5 + $0x38] sm:$0xff]
    %v146 = vld [vmem:[#allocation5 + $0x40] sm:$0xff]
    %v147 = vld [vmem:[#allocation5 + $0x48] sm:$0xff]
    %v148 = vld [vmem:[#allocation5 + $0x50] sm:$0xff]
    %v149 = vld [vmem:[#allocation5 + $0x58] sm:$0xff]
    %v150 = vld [vmem:[#allocation5 + $0x60] sm:$0xff]
    %v151 = vld [vmem:[#allocation5 + $0x68] sm:$0xff]
    %v152 = vld [vmem:[#allocation5 + $0x70] sm:$0xff]
    %v153 = vld [vmem:[#allocation5 + $0x78] sm:$0xff]
    %v154 = vld [vmem:[%s2] sm:$0x1]
    %v156 = vlaneseq
    %v157 = vshrl.u32 %v156, 7
    %v158 = vsub.s32 0, %v157
    %v159 = vrot.slane %v154, %v158
    %161 = vmatprep.subr.mxu0 0.0
    %162 = vmatpush1.msra.mxu0 %v153
    %163 = vmatprep.subr.mxu0 0.0
    %164 = vmatpush1.msra.mxu0 %v152
    %165 = vmatprep.subr.mxu0 0.0
    %166 = vmatpush1.msra.mxu0 %v151
    %167 = vmatprep.subr.mxu0 0.0
    %168 = vmatpush1.msra.mxu0 %v150
    %169 = vmatprep.subr.mxu0 0.0
    %170 = vmatpush1.msra.mxu0 %v149
    %171 = vmatprep.subr.mxu0 0.0
    %172 = vmatpush1.msra.mxu0 %v148
    %173 = vmatprep.subr.mxu0 0.0
    %174 = vmatpush1.msra.mxu0 %v147
    %175 = vmatprep.subr.mxu0 0.0
    %176 = vmatpush1.msra.mxu0 %v146
    %177 = vmatprep.subr.mxu0 0.0
    %178 = vmatpush1.msra.mxu0 %v145
    %179 = vmatprep.subr.mxu0 0.0
    %180 = vmatpush1.msra.mxu0 %v144
    %181 = vmatprep.subr.mxu0 0.0
    %182 = vmatpush1.msra.mxu0 %v143
    %183 = vmatprep.subr.mxu0 0.0
    %184 = vmatpush1.msra.mxu0 %v142
    %185 = vmatprep.subr.mxu0 0.0
    %186 = vmatpush1.msra.mxu0 %v141
    %187 = vmatprep.subr.mxu0 0.0
    %188 = vmatpush1.msra.mxu0 %v140
    %189 = vmatprep.subr.mxu0 0.0
    %190 = vmatpush1.msra.mxu0 %v139
    %191 = vmatprep.subr.mxu0 0.0
    %192 = vmatpush1.msra.mxu0 %v138
    %193 = vmatprep.subr.mxu0 0.0
    %194 = vmatpush2.msra.mxu0 0.0
    %195 = vmatprep.subr.mxu0 0.0
    %196 = vmatpush2.msra.mxu0 0.0
    %197 = vmatprep.subr.mxu0 0.0
    %198 = vmatpush2.msra.mxu0 0.0
    %199 = vmatprep.subr.mxu0 0.0
    %200 = vmatpush2.msra.mxu0 0.0
    %201 = vmatprep.subr.mxu0 0.0
    %202 = vmatpush2.msra.mxu0 0.0
    %203 = vmatprep.subr.mxu0 0.0
    %204 = vmatpush2.msra.mxu0 0.0
    %205 = vmatprep.subr.mxu0 0.0
    %206 = vmatpush2.msra.mxu0 0.0
    %207 = vmatprep.subr.mxu0 0.0
    %208 = vmatpush2.msra.mxu0 0.0
    %209 = vmatprep.subr.mxu0 0.0
    %210 = vmatpush2.msra.mxu0 0.0
    %211 = vmatprep.subr.mxu0 0.0
    %212 = vmatpush2.msra.mxu0 0.0
    %213 = vmatprep.subr.mxu0 0.0
    %214 = vmatpush2.msra.mxu0 0.0
    %215 = vmatprep.subr.mxu0 0.0
    %216 = vmatpush2.msra.mxu0 0.0
    %217 = vmatprep.subr.mxu0 0.0
    %218 = vmatpush2.msra.mxu0 0.0
    %219 = vmatprep.subr.mxu0 0.0
    %220 = vmatpush2.msra.mxu0 0.0
    %221 = vmatprep.subr.mxu0 0.0
    %222 = vmatpush2.msra.mxu0 0.0
    %223 = vmatprep.subr.mxu0 0.0
    %224 = vmatpush2.msra.mxu0 0.0
    %225 = vmatprep.mubr.f32.mxu0 0.0
    %226 = vmatmul.mubr.f32.gmra.mxu0 %v137
    %v227 = vpop.f32.mrf.mxu0
    %v228 = vadd.f32 %v159, %v227
    %v229 = vpop.f32.mrf.mxu0
    %230 = vdwg.mxu0
    %v231 = vmax.f32 %v228, 0.0
    %v232 = vld [vmem:[%s3] sm:$0x1]
    %v234 = vlaneseq
    %v235 = vshrl.u32 %v234, 7
    %v236 = vsub.s32 0, %v235
    %v237 = vrot.slane %v232, %v236
    %v239 = vadd.f32 %v231, %v237
    %v240 = vmax.f32 %v239, 0.0
    %v241 = vld [vmem:[#allocation7] sm:$0xff]
    %v242 = vld [vmem:[#allocation7 + $0x8] sm:$0xff]
    %v243 = vld [vmem:[#allocation7 + $0x10] sm:$0xff]
    %v244 = vld [vmem:[#allocation7 + $0x18] sm:$0xff]
    %v245 = vld [vmem:[#allocation7 + $0x20] sm:$0xff]
    %v246 = vld [vmem:[#allocation7 + $0x28] sm:$0xff]
    %v247 = vld [vmem:[#allocation7 + $0x30] sm:$0xff]
    %v248 = vld [vmem:[#allocation7 + $0x38] sm:$0xff]
    %v249 = vld [vmem:[#allocation7 + $0x40] sm:$0xff]
    %v250 = vld [vmem:[#allocation7 + $0x48] sm:$0xff]
    %v251 = vld [vmem:[#allocation7 + $0x50] sm:$0xff]
    %v252 = vld [vmem:[#allocation7 + $0x58] sm:$0xff]
    %v253 = vld [vmem:[#allocation7 + $0x60] sm:$0xff]
    %v254 = vld [vmem:[#allocation7 + $0x68] sm:$0xff]
    %v255 = vld [vmem:[#allocation7 + $0x70] sm:$0xff]
    %v256 = vld [vmem:[#allocation7 + $0x78] sm:$0xff]
    %v257 = vld [vmem:[%s5] sm:$0x1]
    %v259 = vlaneseq
    %v260 = vshrl.u32 %v259, 7
    %v261 = vsub.s32 0, %v260
    %v262 = vrot.slane %v257, %v261
    %264 = vmatprep.subr.mxu0 0.0
    %265 = vmatpush1.msra.mxu0 %v256
    %266 = vmatprep.subr.mxu0 0.0
    %267 = vmatpush1.msra.mxu0 %v255
    %268 = vmatprep.subr.mxu0 0.0
    %269 = vmatpush1.msra.mxu0 %v254
    %270 = vmatprep.subr.mxu0 0.0
    %271 = vmatpush1.msra.mxu0 %v253
    %272 = vmatprep.subr.mxu0 0.0
    %273 = vmatpush1.msra.mxu0 %v252
    %274 = vmatprep.subr.mxu0 0.0
    %275 = vmatpush1.msra.mxu0 %v251
    %276 = vmatprep.subr.mxu0 0.0
    %277 = vmatpush1.msra.mxu0 %v250
    %278 = vmatprep.subr.mxu0 0.0
    %279 = vmatpush1.msra.mxu0 %v249
    %280 = vmatprep.subr.mxu0 0.0
    %281 = vmatpush1.msra.mxu0 %v248
    %282 = vmatprep.subr.mxu0 0.0
    %283 = vmatpush1.msra.mxu0 %v247
    %284 = vmatprep.subr.mxu0 0.0
    %285 = vmatpush1.msra.mxu0 %v246
    %286 = vmatprep.subr.mxu0 0.0
    %287 = vmatpush1.msra.mxu0 %v245
    %288 = vmatprep.subr.mxu0 0.0
    %289 = vmatpush1.msra.mxu0 %v244
    %290 = vmatprep.subr.mxu0 0.0
    %291 = vmatpush1.msra.mxu0 %v243
    %292 = vmatprep.subr.mxu0 0.0
    %293 = vmatpush1.msra.mxu0 %v242
    %294 = vmatprep.subr.mxu0 0.0
    %295 = vmatpush1.msra.mxu0 %v241
    %296 = vmatprep.subr.mxu0 0.0
    %297 = vmatpush2.msra.mxu0 0.0
    %298 = vmatprep.subr.mxu0 0.0
    %299 = vmatpush2.msra.mxu0 0.0
    %300 = vmatprep.subr.mxu0 0.0
    %301 = vmatpush2.msra.mxu0 0.0
    %302 = vmatprep.subr.mxu0 0.0
    %303 = vmatpush2.msra.mxu0 0.0
    %304 = vmatprep.subr.mxu0 0.0
    %305 = vmatpush2.msra.mxu0 0.0
    %306 = vmatprep.subr.mxu0 0.0
    %307 = vmatpush2.msra.mxu0 0.0
    %308 = vmatprep.subr.mxu0 0.0
    %309 = vmatpush2.msra.mxu0 0.0
    %310 = vmatprep.subr.mxu0 0.0
    %311 = vmatpush2.msra.mxu0 0.0
    %312 = vmatprep.subr.mxu0 0.0
    %313 = vmatpush2.msra.mxu0 0.0
    %314 = vmatprep.subr.mxu0 0.0
    %315 = vmatpush2.msra.mxu0 0.0
    %316 = vmatprep.subr.mxu0 0.0
    %317 = vmatpush2.msra.mxu0 0.0
    %318 = vmatprep.subr.mxu0 0.0
    %319 = vmatpush2.msra.mxu0 0.0
    %320 = vmatprep.subr.mxu0 0.0
    %321 = vmatpush2.msra.mxu0 0.0
    %322 = vmatprep.subr.mxu0 0.0
    %323 = vmatpush2.msra.mxu0 0.0
    %324 = vmatprep.subr.mxu0 0.0
    %325 = vmatpush2.msra.mxu0 0.0
    %326 = vmatprep.subr.mxu0 0.0
    %327 = vmatpush2.msra.mxu0 0.0
    %328 = vmatprep.mubr.f32.mxu0 0.0
    %329 = vmatmul.mubr.f32.gmra.mxu0 %v240
    %v330 = vpop.f32.mrf.mxu0
    %v331 = vadd.f32 %v262, %v330
    %v332 = vpop.f32.mrf.mxu0
    %333 = vdwg.mxu0
    %v334 = vmax.f32 %v331, 0.0
    %v335 = vld [vmem:[%s6] sm:$0x1]
    %v337 = vlaneseq
    %v338 = vshrl.u32 %v337, 7
    %v339 = vsub.s32 0, %v338
    %v340 = vrot.slane %v335, %v339
    %v342 = vadd.f32 %v334, %v340
    %v343 = vmax.f32 %v342, 0.0
    %v344 = vld [vmem:[#allocation8] sm:$0xff]
    %v345 = vld [vmem:[#allocation8 + $0x8] sm:$0xff]
    %v346 = vld [vmem:[#allocation8 + $0x10] sm:$0xff]
    %v347 = vld [vmem:[#allocation8 + $0x18] sm:$0xff]
    %v348 = vld [vmem:[#allocation8 + $0x20] sm:$0xff]
    %v349 = vld [vmem:[#allocation8 + $0x28] sm:$0xff]
    %v350 = vld [vmem:[#allocation8 + $0x30] sm:$0xff]
    %v351 = vld [vmem:[#allocation8 + $0x38] sm:$0xff]
    %v352 = vld [vmem:[#allocation8 + $0x40] sm:$0xff]
    %v353 = vld [vmem:[#allocation8 + $0x48] sm:$0xff]
    %v354 = vld [vmem:[#allocation8 + $0x50] sm:$0xff]
    %v355 = vld [vmem:[#allocation8 + $0x58] sm:$0xff]
    %v356 = vld [vmem:[#allocation8 + $0x60] sm:$0xff]
    %v357 = vld [vmem:[#allocation8 + $0x68] sm:$0xff]
    %v358 = vld [vmem:[#allocation8 + $0x70] sm:$0xff]
    %v359 = vld [vmem:[#allocation8 + $0x78] sm:$0xff]
    %v360 = vld [vmem:[%s8] sm:$0x1]
    %v362 = vlaneseq
    %v363 = vshrl.u32 %v362, 7
    %v364 = vsub.s32 0, %v363
    %v365 = vrot.slane %v360, %v364
    %367 = vmatprep.subr.mxu0 0.0
    %368 = vmatpush1.msra.mxu0 %v359
    %369 = vmatprep.subr.mxu0 0.0
    %370 = vmatpush1.msra.mxu0 %v358
    %371 = vmatprep.subr.mxu0 0.0
    %372 = vmatpush1.msra.mxu0 %v357
    %373 = vmatprep.subr.mxu0 0.0
    %374 = vmatpush1.msra.mxu0 %v356
    %375 = vmatprep.subr.mxu0 0.0
    %376 = vmatpush1.msra.mxu0 %v355
    %377 = vmatprep.subr.mxu0 0.0
    %378 = vmatpush1.msra.mxu0 %v354
    %379 = vmatprep.subr.mxu0 0.0
    %380 = vmatpush1.msra.mxu0 %v353
    %381 = vmatprep.subr.mxu0 0.0
    %382 = vmatpush1.msra.mxu0 %v352
    %383 = vmatprep.subr.mxu0 0.0
    %384 = vmatpush1.msra.mxu0 %v351
    %385 = vmatprep.subr.mxu0 0.0
    %386 = vmatpush1.msra.mxu0 %v350
    %387 = vmatprep.subr.mxu0 0.0
    %388 = vmatpush1.msra.mxu0 %v349
    %389 = vmatprep.subr.mxu0 0.0
    %390 = vmatpush1.msra.mxu0 %v348
    %391 = vmatprep.subr.mxu0 0.0
    %392 = vmatpush1.msra.mxu0 %v347
    %393 = vmatprep.subr.mxu0 0.0
    %394 = vmatpush1.msra.mxu0 %v346
    %395 = vmatprep.subr.mxu0 0.0
    %396 = vmatpush1.msra.mxu0 %v345
    %397 = vmatprep.subr.mxu0 0.0
    %398 = vmatpush1.msra.mxu0 %v344
    %399 = vmatprep.subr.mxu0 0.0
    %400 = vmatpush2.msra.mxu0 0.0
    %401 = vmatprep.subr.mxu0 0.0
    %402 = vmatpush2.msra.mxu0 0.0
    %403 = vmatprep.subr.mxu0 0.0
    %404 = vmatpush2.msra.mxu0 0.0
    %405 = vmatprep.subr.mxu0 0.0
    %406 = vmatpush2.msra.mxu0 0.0
    %407 = vmatprep.subr.mxu0 0.0
    %408 = vmatpush2.msra.mxu0 0.0
    %409 = vmatprep.subr.mxu0 0.0
    %410 = vmatpush2.msra.mxu0 0.0
    %411 = vmatprep.subr.mxu0 0.0
    %412 = vmatpush2.msra.mxu0 0.0
    %413 = vmatprep.subr.mxu0 0.0
    %414 = vmatpush2.msra.mxu0 0.0
    %415 = vmatprep.subr.mxu0 0.0
    %416 = vmatpush2.msra.mxu0 0.0
    %417 = vmatprep.subr.mxu0 0.0
    %418 = vmatpush2.msra.mxu0 0.0
    %419 = vmatprep.subr.mxu0 0.0
    %420 = vmatpush2.msra.mxu0 0.0
    %421 = vmatprep.subr.mxu0 0.0
    %422 = vmatpush2.msra.mxu0 0.0
    %423 = vmatprep.subr.mxu0 0.0
    %424 = vmatpush2.msra.mxu0 0.0
    %425 = vmatprep.subr.mxu0 0.0
    %426 = vmatpush2.msra.mxu0 0.0
    %427 = vmatprep.subr.mxu0 0.0
    %428 = vmatpush2.msra.mxu0 0.0
    %429 = vmatprep.subr.mxu0 0.0
    %430 = vmatpush2.msra.mxu0 0.0
    %431 = vmatprep.mubr.f32.mxu0 0.0
    %432 = vmatmul.mubr.f32.gmra.mxu0 %v343
    %v433 = vpop.f32.mrf.mxu0
    %v434 = vadd.f32 %v365, %v433
    %v435 = vpop.f32.mrf.mxu0
    %436 = vdwg.mxu0
    %v437 = vmax.f32 %v434, 0.0
    %v438 = vld [vmem:[%s9] sm:$0x1]
    %v440 = vlaneseq
    %v441 = vshrl.u32 %v440, 7
    %v442 = vsub.s32 0, %v441
    %v443 = vrot.slane %v438, %v442
    %v445 = vadd.f32 %v437, %v443
    %v446 = vld [vmem:[#allocation10] sm:$0xff]
    %v447 = vld [vmem:[#allocation10 + $0x8] sm:$0xff]
    %v448 = vld [vmem:[#allocation10 + $0x10] sm:$0xff]
    %v449 = vld [vmem:[#allocation10 + $0x18] sm:$0xff]
    %v450 = vld [vmem:[#allocation10 + $0x20] sm:$0xff]
    %v451 = vld [vmem:[#allocation10 + $0x28] sm:$0xff]
    %v452 = vld [vmem:[#allocation10 + $0x30] sm:$0xff]
    %v453 = vld [vmem:[#allocation10 + $0x38] sm:$0xff]
    %v454 = vld [vmem:[#allocation10 + $0x40] sm:$0xff]
    %v455 = vld [vmem:[#allocation10 + $0x48] sm:$0xff]
    %v456 = vld [vmem:[#allocation10 + $0x50] sm:$0xff]
    %v457 = vld [vmem:[#allocation10 + $0x58] sm:$0xff]
    %v458 = vld [vmem:[#allocation10 + $0x60] sm:$0xff]
    %v459 = vld [vmem:[#allocation10 + $0x68] sm:$0xff]
    %v460 = vld [vmem:[#allocation10 + $0x70] sm:$0xff]
    %v461 = vld [vmem:[#allocation10 + $0x78] sm:$0xff]
    %v462 = vld [vmem:[%s11] sm:$0x1]
    %v464 = vlaneseq
    %v465 = vshrl.u32 %v464, 7
    %v466 = vsub.s32 0, %v465
    %v467 = vrot.slane %v462, %v466
    %469 = vmatprep.subr.mxu0 0.0
    %470 = vmatpush1.msra.mxu0 %v461
    %471 = vmatprep.subr.mxu0 0.0
    %472 = vmatpush1.msra.mxu0 %v460
    %473 = vmatprep.subr.mxu0 0.0
    %474 = vmatpush1.msra.mxu0 %v459
    %475 = vmatprep.subr.mxu0 0.0
    %476 = vmatpush1.msra.mxu0 %v458
    %477 = vmatprep.subr.mxu0 0.0
    %478 = vmatpush1.msra.mxu0 %v457
    %479 = vmatprep.subr.mxu0 0.0
    %480 = vmatpush1.msra.mxu0 %v456
    %481 = vmatprep.subr.mxu0 0.0
    %482 = vmatpush1.msra.mxu0 %v455
    %483 = vmatprep.subr.mxu0 0.0
    %484 = vmatpush1.msra.mxu0 %v454
    %485 = vmatprep.subr.mxu0 0.0
    %486 = vmatpush1.msra.mxu0 %v453
    %487 = vmatprep.subr.mxu0 0.0
    %488 = vmatpush1.msra.mxu0 %v452
    %489 = vmatprep.subr.mxu0 0.0
    %490 = vmatpush1.msra.mxu0 %v451
    %491 = vmatprep.subr.mxu0 0.0
    %492 = vmatpush1.msra.mxu0 %v450
    %493 = vmatprep.subr.mxu0 0.0
    %494 = vmatpush1.msra.mxu0 %v449
    %495 = vmatprep.subr.mxu0 0.0
    %496 = vmatpush1.msra.mxu0 %v448
    %497 = vmatprep.subr.mxu0 0.0
    %498 = vmatpush1.msra.mxu0 %v447
    %499 = vmatprep.subr.mxu0 0.0
    %500 = vmatpush1.msra.mxu0 %v446
    %501 = vmatprep.subr.mxu0 0.0
    %502 = vmatpush2.msra.mxu0 0.0
    %503 = vmatprep.subr.mxu0 0.0
    %504 = vmatpush2.msra.mxu0 0.0
    %505 = vmatprep.subr.mxu0 0.0
    %506 = vmatpush2.msra.mxu0 0.0
    %507 = vmatprep.subr.mxu0 0.0
    %508 = vmatpush2.msra.mxu0 0.0
    %509 = vmatprep.subr.mxu0 0.0
    %510 = vmatpush2.msra.mxu0 0.0
    %511 = vmatprep.subr.mxu0 0.0
    %512 = vmatpush2.msra.mxu0 0.0
    %513 = vmatprep.subr.mxu0 0.0
    %514 = vmatpush2.msra.mxu0 0.0
    %515 = vmatprep.subr.mxu0 0.0
    %516 = vmatpush2.msra.mxu0 0.0
    %517 = vmatprep.subr.mxu0 0.0
    %518 = vmatpush2.msra.mxu0 0.0
    %519 = vmatprep.subr.mxu0 0.0
    %520 = vmatpush2.msra.mxu0 0.0
    %521 = vmatprep.subr.mxu0 0.0
    %522 = vmatpush2.msra.mxu0 0.0
    %523 = vmatprep.subr.mxu0 0.0
    %524 = vmatpush2.msra.mxu0 0.0
    %525 = vmatprep.subr.mxu0 0.0
    %526 = vmatpush2.msra.mxu0 0.0
    %527 = vmatprep.subr.mxu0 0.0
    %528 = vmatpush2.msra.mxu0 0.0
    %529 = vmatprep.subr.mxu0 0.0
    %530 = vmatpush2.msra.mxu0 0.0
    %531 = vmatprep.subr.mxu0 0.0
    %532 = vmatpush2.msra.mxu0 0.0
    %533 = vmatprep.mubr.f32.mxu0 0.0
    %534 = vmatmul.mubr.f32.gmra.mxu0 %v445
    %v535 = vpop.f32.mrf.mxu0
    %v536 = vadd.f32 %v467, %v535
    %v537 = vpop.f32.mrf.mxu0
    %538 = vdwg.mxu0
    %v539 = vmax.f32 %v536, 0.0
    %v540 = vld [vmem:[%s12] sm:$0x1]
    %v542 = vlaneseq
    %v543 = vshrl.u32 %v542, 7
    %v544 = vsub.s32 0, %v543
    %v545 = vrot.slane %v540, %v544
    %v547 = vadd.f32 %v539, %v545
    %v548 = vld [vmem:[#allocation11] sm:$0xff]
    %v549 = vld [vmem:[#allocation11 + $0x8] sm:$0xff]
    %v550 = vld [vmem:[#allocation11 + $0x10] sm:$0xff]
    %v551 = vld [vmem:[#allocation11 + $0x18] sm:$0xff]
    %v552 = vld [vmem:[#allocation11 + $0x20] sm:$0xff]
    %v553 = vld [vmem:[#allocation11 + $0x28] sm:$0xff]
    %v554 = vld [vmem:[#allocation11 + $0x30] sm:$0xff]
    %v555 = vld [vmem:[#allocation11 + $0x38] sm:$0xff]
    %v556 = vld [vmem:[#allocation11 + $0x40] sm:$0xff]
    %v557 = vld [vmem:[#allocation11 + $0x48] sm:$0xff]
    %v558 = vld [vmem:[#allocation11 + $0x50] sm:$0xff]
    %v559 = vld [vmem:[#allocation11 + $0x58] sm:$0xff]
    %v560 = vld [vmem:[#allocation11 + $0x60] sm:$0xff]
    %v561 = vld [vmem:[#allocation11 + $0x68] sm:$0xff]
    %v562 = vld [vmem:[#allocation11 + $0x70] sm:$0xff]
    %v563 = vld [vmem:[#allocation11 + $0x78] sm:$0xff]
    %v564 = vld [vmem:[%s14] sm:$0x1]
    %v566 = vlaneseq
    %v567 = vshrl.u32 %v566, 7
    %v568 = vsub.s32 0, %v567
    %v569 = vrot.slane %v564, %v568
    %571 = vmatprep.subr.mxu0 0.0
    %572 = vmatpush1.msra.mxu0 %v563
    %573 = vmatprep.subr.mxu0 0.0
    %574 = vmatpush1.msra.mxu0 %v562
    %575 = vmatprep.subr.mxu0 0.0
    %576 = vmatpush1.msra.mxu0 %v561
    %577 = vmatprep.subr.mxu0 0.0
    %578 = vmatpush1.msra.mxu0 %v560
    %579 = vmatprep.subr.mxu0 0.0
    %580 = vmatpush1.msra.mxu0 %v559
    %581 = vmatprep.subr.mxu0 0.0
    %582 = vmatpush1.msra.mxu0 %v558
    %583 = vmatprep.subr.mxu0 0.0
    %584 = vmatpush1.msra.mxu0 %v557
    %585 = vmatprep.subr.mxu0 0.0
    %586 = vmatpush1.msra.mxu0 %v556
    %587 = vmatprep.subr.mxu0 0.0
    %588 = vmatpush1.msra.mxu0 %v555
    %589 = vmatprep.subr.mxu0 0.0
    %590 = vmatpush1.msra.mxu0 %v554
    %591 = vmatprep.subr.mxu0 0.0
    %592 = vmatpush1.msra.mxu0 %v553
    %593 = vmatprep.subr.mxu0 0.0
    %594 = vmatpush1.msra.mxu0 %v552
    %595 = vmatprep.subr.mxu0 0.0
    %596 = vmatpush1.msra.mxu0 %v551
    %597 = vmatprep.subr.mxu0 0.0
    %598 = vmatpush1.msra.mxu0 %v550
    %599 = vmatprep.subr.mxu0 0.0
    %600 = vmatpush1.msra.mxu0 %v549
    %601 = vmatprep.subr.mxu0 0.0
    %602 = vmatpush1.msra.mxu0 %v548
    %603 = vmatprep.subr.mxu0 0.0
    %604 = vmatpush2.msra.mxu0 0.0
    %605 = vmatprep.subr.mxu0 0.0
    %606 = vmatpush2.msra.mxu0 0.0
    %607 = vmatprep.subr.mxu0 0.0
    %608 = vmatpush2.msra.mxu0 0.0
    %609 = vmatprep.subr.mxu0 0.0
    %610 = vmatpush2.msra.mxu0 0.0
    %611 = vmatprep.subr.mxu0 0.0
    %612 = vmatpush2.msra.mxu0 0.0
    %613 = vmatprep.subr.mxu0 0.0
    %614 = vmatpush2.msra.mxu0 0.0
    %615 = vmatprep.subr.mxu0 0.0
    %616 = vmatpush2.msra.mxu0 0.0
    %617 = vmatprep.subr.mxu0 0.0
    %618 = vmatpush2.msra.mxu0 0.0
    %619 = vmatprep.subr.mxu0 0.0
    %620 = vmatpush2.msra.mxu0 0.0
    %621 = vmatprep.subr.mxu0 0.0
    %622 = vmatpush2.msra.mxu0 0.0
    %623 = vmatprep.subr.mxu0 0.0
    %624 = vmatpush2.msra.mxu0 0.0
    %625 = vmatprep.subr.mxu0 0.0
    %626 = vmatpush2.msra.mxu0 0.0
    %627 = vmatprep.subr.mxu0 0.0
    %628 = vmatpush2.msra.mxu0 0.0
    %629 = vmatprep.subr.mxu0 0.0
    %630 = vmatpush2.msra.mxu0 0.0
    %631 = vmatprep.subr.mxu0 0.0
    %632 = vmatpush2.msra.mxu0 0.0
    %633 = vmatprep.subr.mxu0 0.0
    %634 = vmatpush2.msra.mxu0 0.0
    %635 = vmatprep.mubr.f32.mxu0 0.0
    %636 = vmatmul.mubr.f32.gmra.mxu0 %v547
    %v637 = vpop.f32.mrf.mxu0
    %v638 = vadd.f32 %v569, %v637
    %v639 = vpop.f32.mrf.mxu0
    %640 = vdwg.mxu0
    %v641 = vmax.f32 %v638, 0.0
    %v642 = vld [vmem:[%s15] sm:$0x1]
    %v644 = vlaneseq
    %v645 = vshrl.u32 %v644, 7
    %v646 = vsub.s32 0, %v645
    %v647 = vrot.slane %v642, %v646
    %v649 = vadd.f32 %v641, %v647
    %v650 = vmax.f32 %v649, 0.0
    %v651 = vld [vmem:[%s16] sm:$0x1]
    %v653 = vlaneseq
    %v654 = vshrl.u32 %v653, 7
    %v655 = vsub.s32 0, %v654
    %v656 = vrot.slane %v651, %v655
    %v658 = vadd.f32 %v650, %v656
    %659 = vst [vmem:[#allocation13] sm:$0xff] %v658
    // Predicated region
    $region94: #{tpu_custom_call.1} parent=1 // pred_check
      _
    $region95: #{tpu_custom_call.1} parent=1 // pred_check_branch
      %661 = sbr.rel (0) target = $region97
    $region96: #{tpu_custom_call.1} parent=1 // pred_region
      %s663 = ssub.s32 128, 128
      %664 = vsyncadd [#allocation4], %s663
      %s666 = sshll.u32 [#allocation13], 4
      %s667 = int_to_ptr.vmem [resolvable:$true] %s666
      %669 = dma.vmem_to_hbm [thread:$0]  %s667, 128, %s17, [#allocation4]
    $region97: #{tpu_custom_call.1} parent=1 // pred_fallthru
      _
    // Predicated region
    $region98: #{tpu_custom_call.1} parent=1 // pred_check
      _
    $region99: #{tpu_custom_call.1} parent=1 // pred_check_branch
      %671 = sbr.rel (0) target = $region101
    $region100: #{tpu_custom_call.1} parent=1 // pred_region
      %672 = dma.done [#allocation4], 128
    $region101: #{tpu_custom_call.1} parent=1 // pred_fallthru
      _
    %673 = vsyncpa [#allocation3], 1
    %674 = vsyncpa [#allocation6], 1
    %675 = vsyncpa [#allocation9], 1
    %676 = vsyncpa [#allocation12], 1
    %677 = vsyncpa [#allocation4], 1

</llo_original>
